<compile_context>
chip_gen: v5e
topology: v5e:2x2
jax: 0.10.0
libtpu: 0.0.40
codegen_flags: <defaults>
</compile_context>

<pallas_src>
import functools
import math

import jax
import jax.numpy as jnp
from jax.experimental import pallas as pl
from jax.experimental.pallas import tpu as pltpu

_LN_EPS = 1e-5        # PyTorch nn.LayerNorm default
_NEG_BIG = -1e30      # finite causal-mask fill (no -inf -> no NaN risk)


def _nt_dot(a, b):
    """a @ b.T without materializing the transpose (contract last axes on MXU)."""
    return jax.lax.dot_general(
        a, b, (((1,), (1,)), ((), ())), preferred_element_type=jnp.float32)


def _layernorm(z, gamma, beta):
    mu = jnp.mean(z, axis=-1, keepdims=True)
    zc = z - mu
    var = jnp.mean(zc * zc, axis=-1, keepdims=True)
    return zc * jax.lax.rsqrt(var + _LN_EPS) * gamma + beta


def _block_kernel(num_heads, num_groups, head_size,
                  x_ref,
                  ln1w_ref, ln1b_ref,
                  wattn_ref,
                  wproj_ref, bproj_ref,
                  ln2w_ref, ln2b_ref,
                  wfc1_ref, bfc1_ref,
                  wfc2_ref, bfc2_ref,
                  o_ref):
    x = x_ref[0]                                   # (T, C) f32
    T, C = x.shape
    H = head_size
    NH, NG = num_heads, num_groups
    HPG = NH // NG
    k_base = NH * H
    v_base = (NH + NG) * H
    scale = H ** (-0.5)

    # ---- LayerNorm 1 (f32) ----
    h1 = _layernorm(x, ln1w_ref[...], ln1b_ref[...])            # (T, C) f32
    h1_b = h1.astype(jnp.bfloat16)

    # ---- single fused Q/K/V projection (bf16 MXU, f32 accumulate) ----
    qkv = _nt_dot(h1_b, wattn_ref[...])            # (T, (NH+2NG)*H) f32

    # causal mask built once, reused by every head (hoisted out of the loop)
    row = jax.lax.broadcasted_iota(jnp.int32, (T, T), 0)
    col = jax.lax.broadcasted_iota(jnp.int32, (T, T), 1)
    causal = row >= col

    # ---- grouped-query causal attention ----
    # TODO(synk): at production NH / head_size switch this statically unrolled
    # Python loop to lax.fori_loop over a (T, NH*H) VMEM scratch.
    head_outs = []
    for g in range(NG):
        # shared K / V for this group: lane slices of the fused qkv result
        kg = qkv[:, k_base + g * H:k_base + (g + 1) * H].astype(jnp.bfloat16)  # (T, H)
        vg = qkv[:, v_base + g * H:v_base + (g + 1) * H].astype(jnp.bfloat16)  # (T, H)
        for j in range(HPG):
            h = g * HPG + j
            # scale applied to q (T, H), not to the (T, T) score matrix
            qh = (qkv[:, h * H:(h + 1) * H] * scale).astype(jnp.bfloat16)      # (T, H)
            s = _nt_dot(qh, kg)                                                # (T, T) f32
            s = jnp.where(causal, s, _NEG_BIG)     # diag always unmasked
            m = jnp.max(s, axis=-1, keepdims=True)
            p = jnp.exp(s - m)                     # unnormalized, in [0, 1]
            denom = jnp.sum(p, axis=-1, keepdims=True)
            # TODO(synk): attention-weight nn.Dropout is identity (eval / p=0).
            oh = jnp.dot(p.astype(jnp.bfloat16), vg,
                         preferred_element_type=jnp.float32)                   # (T, H) f32
            # exact normalization applied to the (T, H) result, not (T, T)
            head_outs.append(oh / denom)

    # ---- single output projection over the concatenated heads ----
    heads = jnp.concatenate(head_outs, axis=-1).astype(jnp.bfloat16)  # (T, NH*H)
    sa = _nt_dot(heads, wproj_ref[...]) + bproj_ref[...]              # (T, C) f32

    # ---- residual 1 (f32) ----
    x1 = x + sa

    # ---- LayerNorm 2 + MLP (Linear -> ReLU -> Linear), bf16 MXU ----
    h2 = _layernorm(x1, ln2w_ref[...], ln2b_ref[...]).astype(jnp.bfloat16)
    ff = _nt_dot(h2, wfc1_ref[...]) + bfc1_ref[...]          # (T, 4C) f32
    ff = jnp.maximum(ff, 0.0).astype(jnp.bfloat16)
    ff = _nt_dot(ff, wfc2_ref[...]) + bfc2_ref[...]          # (T, C) f32
    # TODO(synk): proj / MLP nn.Dropout are identity in eval mode and omitted.

    # ---- residual 2 + full-width store ----
    # TODO(synk): at C=32 (<128 lanes) this store is a masked vst; real
    # configs should use C % 128 == 0 for lane-dense output stores.
    o_ref[0] = (x1 + ff).astype(o_ref.dtype)


def block_forward(x,
                  ln1_w, ln1_b,
                  wq_heads, wk_groups, wv_groups,
                  proj_w, proj_b,
                  ln2_w, ln2_b,
                  fc1_w, fc1_b,
                  fc2_w, fc2_b):
    """Transformer Block forward.

    x: (B, T, C) float32.
    wq_heads: (num_heads, head_size, n_embd) -- PyTorch nn.Linear (out, in)
        layout, heads ordered group-major.  wk_groups / wv_groups:
        (num_groups, head_size, n_embd).  proj_w: (n_embd, num_heads*head_size),
        fc1_w: (4*n_embd, n_embd), fc2_w: (n_embd, 4*n_embd); biases 1-D.
    """
    B, T, C = x.shape
    NH, H, _ = wq_heads.shape
    NG = wk_groups.shape[0]
    D_attn = (NH + 2 * NG) * H
    F = fc1_w.shape[0]                       # 4 * n_embd

    # fused attention weight rows = [q_0..q_{NH-1} | k_0..k_{NG-1} | v_0..v_{NG-1}]
    # Weights feeding the MXU are bf16 (halves DMA bytes / VMEM footprint);
    # biases, LN params and all accumulation stay f32.
    w_attn = jnp.concatenate(
        [wq_heads.reshape(NH * H, C),
         wk_groups.reshape(NG * H, C),
         wv_groups.reshape(NG * H, C)], axis=0).astype(jnp.bfloat16)   # (D_attn, C)

    kernel = functools.partial(_block_kernel, NH, NG, H)
    full = lambda b: (0, 0)   # weights/biases: same block every step -> DMA'd once

    flops = B * (2 * T * C * D_attn            # fused qkv projection
                 + NH * 4 * T * T * H          # scores + p@v per head
                 + 2 * T * (NH * H) * C        # output projection
                 + 4 * T * C * F)              # fc1 + fc2
    transcendentals = B * (NH * T * T + 2 * T)           # exp + rsqrt (approx)
    bytes_accessed = (2 * B * T * C * 4                               # x in + out
                      + 2 * (D_attn * C + C * NH * H + 2 * F * C)     # bf16 weights
                      + 4 * (5 * C + F))                              # f32 bias/LN

    return pl.pallas_call(
        kernel,
        out_shape=jax.ShapeDtypeStruct((B, T, C), x.dtype),
        grid_spec=pltpu.PrefetchScalarGridSpec(
            num_scalar_prefetch=0,
            grid=(B,),
            in_specs=[
                pl.BlockSpec((1, T, C), lambda b: (b, 0, 0)),     # x
                pl.BlockSpec((1, C), full),                       # ln1 gamma
                pl.BlockSpec((1, C), full),                       # ln1 beta
                pl.BlockSpec((D_attn, C), full),                  # fused q/k/v weight
                pl.BlockSpec((C, NH * H), full),                  # proj weight (out, in)
                pl.BlockSpec((1, C), full),                       # proj bias
                pl.BlockSpec((1, C), full),                       # ln2 gamma
                pl.BlockSpec((1, C), full),                       # ln2 beta
                pl.BlockSpec((F, C), full),                       # fc1 weight (out, in)
                pl.BlockSpec((1, F), full),                       # fc1 bias
                pl.BlockSpec((C, F), full),                       # fc2 weight (out, in)
                pl.BlockSpec((1, C), full),                       # fc2 bias
            ],
            out_specs=pl.BlockSpec((1, T, C), lambda b: (b, 0, 0)),
        ),
        compiler_params=pltpu.CompilerParams(
            # batch axis stays "parallel" so v7x's two TensorCores split it
            dimension_semantics=("parallel",),
        ),
        cost_estimate=pl.CostEstimate(
            flops=flops, transcendentals=transcendentals,
            bytes_accessed=bytes_accessed),
    )(x,
      ln1_w.reshape(1, C), ln1_b.reshape(1, C),
      w_attn,
      proj_w.astype(jnp.bfloat16), proj_b.reshape(1, C),
      ln2_w.reshape(1, C), ln2_b.reshape(1, C),
      fc1_w.astype(jnp.bfloat16), fc1_b.reshape(1, F),
      fc2_w.astype(jnp.bfloat16), fc2_b.reshape(1, C))


def block_reference(x, ln1_w, ln1_b, wq_heads, wk_groups, wv_groups,
                    proj_w, proj_b, ln2_w, ln2_b, fc1_w, fc1_b, fc2_w, fc2_b,
                    *, num_heads, num_groups):
    """Pure-JAX f32 reference matching the PyTorch Block forward (eval mode)."""
    H = wq_heads.shape[1]
    hpg = num_heads // num_groups
    T = x.shape[1]

    h1 = _layernorm(x, ln1_w, ln1_b)
    tril = jnp.tril(jnp.ones((T, T), dtype=bool))

    head_outs = []
    for g in range(num_groups):
        k = h1 @ wk_groups[g].T
        v = h1 @ wv_groups[g].T
        for j in range(hpg):
            q = h1 @ wq_heads[g * hpg + j].T
            wei = (q @ jnp.swapaxes(k, -2, -1)) * (H ** (-0.5))
            wei = jnp.where(tril, wei, -jnp.inf)
            wei = jax.nn.softmax(wei, axis=-1)
            head_outs.append(wei @ v)

    sa = jnp.concatenate(head_outs, axis=-1) @ proj_w.T + proj_b
    x = x + sa
    h2 = _layernorm(x, ln2_w, ln2_b)
    ff = jnp.maximum(h2 @ fc1_w.T + fc1_b, 0.0) @ fc2_w.T + fc2_b
    return x + ff


if __name__ == "__main__":
    # small shapes consistent with the module
    B, T = 2, 8              # batch, sequence (block_size == T)
    n_embd = 32
    n_head = 4
    num_groups = 2
    head_size = n_embd // n_head      # 8
    hidden = 4 * n_embd               # 128
    # dropout = 0.0 -> every nn.Dropout is identity in this port

    key = jax.random.PRNGKey(0)
    ks = jax.random.split(key, 12)

    x = jax.random.normal(ks[0], (B, T, n_embd), dtype=jnp.float32)

    bc = 1.0 / math.sqrt(n_embd)
    bp = 1.0 / math.sqrt(head_size * n_head)
    bh = 1.0 / math.sqrt(hidden)

    # attention params, PyTorch nn.Linear (out, in) layout
    wq_heads = jax.random.uniform(ks[1], (n_head, head_size, n_embd), jnp.float32, -bc, bc)
    wk_groups = jax.random.uniform(ks[2], (num_groups, head_size, n_embd), jnp.float32, -bc, bc)
    wv_groups = jax.random.uniform(ks[3], (num_groups, head_size, n_embd), jnp.float32, -bc, bc)
    proj_w = jax.random.uniform(ks[4], (n_embd, head_size * n_head), jnp.float32, -bp, bp)
    proj_b = jax.random.uniform(ks[5], (n_embd,), jnp.float32, -bp, bp)

    # MLP params
    fc1_w = jax.random.uniform(ks[6], (hidden, n_embd), jnp.float32, -bc, bc)
    fc1_b = jax.random.uniform(ks[7], (hidden,), jnp.float32, -bc, bc)
    fc2_w = jax.random.uniform(ks[8], (n_embd, hidden), jnp.float32, -bh, bh)
    fc2_b = jax.random.uniform(ks[9], (n_embd,), jnp.float32, -bh, bh)

    # LayerNorm affine params (non-default so the test exercises them)
    ln1_w = 1.0 + 0.1 * jax.random.normal(ks[10], (n_embd,), jnp.float32)
    ln1_b = 0.1 * jax.random.normal(ks[11], (n_embd,), jnp.float32)
    ln2_w = jnp.full((n_embd,), 0.9, jnp.float32)
    ln2_b = jnp.full((n_embd,), 0.05, jnp.float32)

    out = block_forward(x, ln1_w, ln1_b, wq_heads, wk_groups, wv_groups,
                        proj_w, proj_b, ln2_w, ln2_b,
                        fc1_w, fc1_b, fc2_w, fc2_b)
    out = jax.block_until_ready(out)

    ref = block_reference(x, ln1_w, ln1_b, wq_heads, wk_groups, wv_groups,
                          proj_w, proj_b, ln2_w, ln2_b,
                          fc1_w, fc1_b, fc2_w, fc2_b,
                          num_heads=n_head, num_groups=num_groups)

    assert out.shape == (B, T, n_embd)
    # softmax normalization is exact now; remaining tolerance covers the bf16
    # MXU operands (f32 accumulation).  Real bugs show up as O(0.1 - 1).
    assert jnp.allclose(out, ref, atol=2e-2, rtol=2e-2), (
        f"mismatch vs reference: max abs err = {jnp.max(jnp.abs(out - ref))}")

    print("KERNEL_OK")
</pallas_src>

<mosaic_0001>
module attributes {stable_mosaic.version = 11 : i64} {
  func.func @_block_kernel(%arg0: i32, %arg1: memref<1x8x32xf32, #tpu.memory_space<vmem>>, %arg2: memref<1x32xf32, #tpu.memory_space<vmem>>, %arg3: memref<1x32xf32, #tpu.memory_space<vmem>>, %arg4: memref<64x32xbf16, #tpu.memory_space<vmem>>, %arg5: memref<32x32xbf16, #tpu.memory_space<vmem>>, %arg6: memref<1x32xf32, #tpu.memory_space<vmem>>, %arg7: memref<1x32xf32, #tpu.memory_space<vmem>>, %arg8: memref<1x32xf32, #tpu.memory_space<vmem>>, %arg9: memref<128x32xbf16, #tpu.memory_space<vmem>>, %arg10: memref<1x128xf32, #tpu.memory_space<vmem>>, %arg11: memref<32x128xbf16, #tpu.memory_space<vmem>>, %arg12: memref<1x32xf32, #tpu.memory_space<vmem>>, %arg13: memref<1x8x32xf32, #tpu.memory_space<vmem>>) attributes {dimension_semantics = [#tpu.dimension_semantics<parallel>], iteration_bounds = array<i64: 2>, scalar_prefetch = 0 : i64, scratch_operands = 0 : i64, tpu.core_type = #tpu.core_type<tc>, window_params = [{transform_indices = @transform_0, window_bounds = array<i64: 1, 8, 32>}, {pipeline_mode = #tpu.pipeline_mode<synchronous>, transform_indices = @transform_1, window_bounds = array<i64: 1, 32>}, {pipeline_mode = #tpu.pipeline_mode<synchronous>, transform_indices = @transform_2, window_bounds = array<i64: 1, 32>}, {pipeline_mode = #tpu.pipeline_mode<synchronous>, transform_indices = @transform_3, window_bounds = array<i64: 64, 32>}, {pipeline_mode = #tpu.pipeline_mode<synchronous>, transform_indices = @transform_4, window_bounds = array<i64: 32, 32>}, {pipeline_mode = #tpu.pipeline_mode<synchronous>, transform_indices = @transform_5, window_bounds = array<i64: 1, 32>}, {pipeline_mode = #tpu.pipeline_mode<synchronous>, transform_indices = @transform_6, window_bounds = array<i64: 1, 32>}, {pipeline_mode = #tpu.pipeline_mode<synchronous>, transform_indices = @transform_7, window_bounds = array<i64: 1, 32>}, {pipeline_mode = #tpu.pipeline_mode<synchronous>, transform_indices = @transform_8, window_bounds = array<i64: 128, 32>}, {pipeline_mode = #tpu.pipeline_mode<synchronous>, transform_indices = @transform_9, window_bounds = array<i64: 1, 128>}, {pipeline_mode = #tpu.pipeline_mode<synchronous>, transform_indices = @transform_10, window_bounds = array<i64: 32, 128>}, {pipeline_mode = #tpu.pipeline_mode<synchronous>, transform_indices = @transform_11, window_bounds = array<i64: 1, 32>}, {transform_indices = @transform_12, window_bounds = array<i64: 1, 8, 32>}]} {
    %c0 = arith.constant 0 : index
    %c0_0 = arith.constant 0 : index
    %c0_1 = arith.constant 0 : index
    %0 = vector.load %arg1[%c0, %c0_0, %c0_1] : memref<1x8x32xf32, #tpu.memory_space<vmem>>, vector<1x8x32xf32>
    %1 = vector.shape_cast %0 : vector<1x8x32xf32> to vector<8x32xf32>
    %c0_2 = arith.constant 0 : index
    %c0_3 = arith.constant 0 : index
    %2 = vector.load %arg2[%c0_2, %c0_3] : memref<1x32xf32, #tpu.memory_space<vmem>>, vector<1x32xf32>
    %c0_4 = arith.constant 0 : index
    %c0_5 = arith.constant 0 : index
    %3 = vector.load %arg3[%c0_4, %c0_5] : memref<1x32xf32, #tpu.memory_space<vmem>>, vector<1x32xf32>
    %cst = arith.constant dense<0.000000e+00> : vector<8xf32>
    %4 = vector.multi_reduction <add>, %1, %cst [1] : vector<8x32xf32> to vector<8xf32>
    %5 = vector.shape_cast %4 : vector<8xf32> to vector<8x1xf32>
    %cst_6 = arith.constant 3.200000e+01 : f32
    %6 = vector.broadcast %cst_6 : f32 to vector<8x1xf32>
    %7 = arith.divf %5, %6 : vector<8x1xf32>
    %8 = vector.broadcast %7 : vector<8x1xf32> to vector<8x32xf32>
    %9 = arith.subf %1, %8 : vector<8x32xf32>
    %10 = arith.mulf %9, %9 : vector<8x32xf32>
    %cst_7 = arith.constant dense<0.000000e+00> : vector<8xf32>
    %11 = vector.multi_reduction <add>, %10, %cst_7 [1] : vector<8x32xf32> to vector<8xf32>
    %12 = vector.shape_cast %11 : vector<8xf32> to vector<8x1xf32>
    %cst_8 = arith.constant 3.200000e+01 : f32
    %13 = vector.broadcast %cst_8 : f32 to vector<8x1xf32>
    %14 = arith.divf %12, %13 : vector<8x1xf32>
    %cst_9 = arith.constant 9.99999974E-6 : f32
    %15 = vector.broadcast %cst_9 : f32 to vector<8x1xf32>
    %16 = arith.addf %14, %15 : vector<8x1xf32>
    %17 = math.rsqrt %16 : vector<8x1xf32>
    %18 = vector.broadcast %17 : vector<8x1xf32> to vector<8x32xf32>
    %19 = arith.mulf %9, %18 : vector<8x32xf32>
    %20 = vector.broadcast %2 : vector<1x32xf32> to vector<8x32xf32>
    %21 = arith.mulf %19, %20 : vector<8x32xf32>
    %22 = vector.broadcast %3 : vector<1x32xf32> to vector<8x32xf32>
    %23 = arith.addf %21, %22 : vector<8x32xf32>
    %24 = arith.truncf %23 : vector<8x32xf32> to vector<8x32xbf16>
    %c0_10 = arith.constant 0 : index
    %c0_11 = arith.constant 0 : index
    %25 = vector.load %arg4[%c0_10, %c0_11] : memref<64x32xbf16, #tpu.memory_space<vmem>>, vector<64x32xbf16>
    %cst_12 = arith.constant dense<0.000000e+00> : vector<8x64xf32>
    %26 = tpu.matmul %24, %25, %cst_12 {dimension_numbers = #tpu.dot_dimension_numbers<[1], [1], [0], [0], [0, 0, 1, 0], [], []>} : vector<8x32xbf16>, vector<64x32xbf16>, vector<8x64xf32> -> vector<8x64xf32>
    %27 = tpu.iota {dimensions = array<i32: 0>} : vector<8x8xi32>
    %28 = tpu.iota {dimensions = array<i32: 1>} : vector<8x8xi32>
    %29 = arith.cmpi sge, %27, %28 : vector<8x8xi32>
    %30 = vector.extract_strided_slice %26 {offsets = [0, 32], sizes = [8, 8], strides = [1, 1]} : vector<8x64xf32> to vector<8x8xf32>
    %31 = arith.truncf %30 : vector<8x8xf32> to vector<8x8xbf16>
    %32 = vector.extract_strided_slice %26 {offsets = [0, 48], sizes = [8, 8], strides = [1, 1]} : vector<8x64xf32> to vector<8x8xf32>
    %33 = arith.truncf %32 : vector<8x8xf32> to vector<8x8xbf16>
    %34 = vector.extract_strided_slice %26 {offsets = [0, 0], sizes = [8, 8], strides = [1, 1]} : vector<8x64xf32> to vector<8x8xf32>
    %cst_13 = arith.constant 0.353553385 : f32
    %35 = vector.broadcast %cst_13 : f32 to vector<8x8xf32>
    %36 = arith.mulf %34, %35 : vector<8x8xf32>
    %37 = arith.truncf %36 : vector<8x8xf32> to vector<8x8xbf16>
    %cst_14 = arith.constant dense<0.000000e+00> : vector<8x8xf32>
    %38 = tpu.matmul %37, %31, %cst_14 {dimension_numbers = #tpu.dot_dimension_numbers<[1], [1], [0], [0], [0, 0, 1, 0], [], []>} : vector<8x8xbf16>, vector<8x8xbf16>, vector<8x8xf32> -> vector<8x8xf32>
    %cst_15 = arith.constant -1.000000e+30 : f32
    %39 = vector.broadcast %cst_15 : f32 to vector<8x8xf32>
    %40 = arith.select %29, %38, %39 : vector<8x8xi1>, vector<8x8xf32>
    %cst_16 = arith.constant dense<0xFF800000> : vector<8xf32>
    %41 = vector.multi_reduction <maximumf>, %40, %cst_16 [1] : vector<8x8xf32> to vector<8xf32>
    %42 = vector.shape_cast %41 : vector<8xf32> to vector<8x1xf32>
    %43 = vector.broadcast %42 : vector<8x1xf32> to vector<8x8xf32>
    %44 = arith.subf %40, %43 : vector<8x8xf32>
    %45 = math.exp %44 : vector<8x8xf32>
    %cst_17 = arith.constant dense<0.000000e+00> : vector<8xf32>
    %46 = vector.multi_reduction <add>, %45, %cst_17 [1] : vector<8x8xf32> to vector<8xf32>
    %47 = vector.shape_cast %46 : vector<8xf32> to vector<8x1xf32>
    %48 = arith.truncf %45 : vector<8x8xf32> to vector<8x8xbf16>
    %cst_18 = arith.constant dense<0.000000e+00> : vector<8x8xf32>
    %49 = tpu.matmul %48, %33, %cst_18 {dimension_numbers = #tpu.dot_dimension_numbers<[1], [0], [0], [1], [0, 0, 1, 1], [], []>} : vector<8x8xbf16>, vector<8x8xbf16>, vector<8x8xf32> -> vector<8x8xf32>
    %50 = vector.broadcast %47 : vector<8x1xf32> to vector<8x8xf32>
    %51 = arith.divf %49, %50 : vector<8x8xf32>
    %52 = vector.extract_strided_slice %26 {offsets = [0, 8], sizes = [8, 8], strides = [1, 1]} : vector<8x64xf32> to vector<8x8xf32>
    %cst_19 = arith.constant 0.353553385 : f32
    %53 = vector.broadcast %cst_19 : f32 to vector<8x8xf32>
    %54 = arith.mulf %52, %53 : vector<8x8xf32>
    %55 = arith.truncf %54 : vector<8x8xf32> to vector<8x8xbf16>
    %cst_20 = arith.constant dense<0.000000e+00> : vector<8x8xf32>
    %56 = tpu.matmul %55, %31, %cst_20 {dimension_numbers = #tpu.dot_dimension_numbers<[1], [1], [0], [0], [0, 0, 1, 0], [], []>} : vector<8x8xbf16>, vector<8x8xbf16>, vector<8x8xf32> -> vector<8x8xf32>
    %cst_21 = arith.constant -1.000000e+30 : f32
    %57 = vector.broadcast %cst_21 : f32 to vector<8x8xf32>
    %58 = arith.select %29, %56, %57 : vector<8x8xi1>, vector<8x8xf32>
    %cst_22 = arith.constant dense<0xFF800000> : vector<8xf32>
    %59 = vector.multi_reduction <maximumf>, %58, %cst_22 [1] : vector<8x8xf32> to vector<8xf32>
    %60 = vector.shape_cast %59 : vector<8xf32> to vector<8x1xf32>
    %61 = vector.broadcast %60 : vector<8x1xf32> to vector<8x8xf32>
    %62 = arith.subf %58, %61 : vector<8x8xf32>
    %63 = math.exp %62 : vector<8x8xf32>
    %cst_23 = arith.constant dense<0.000000e+00> : vector<8xf32>
    %64 = vector.multi_reduction <add>, %63, %cst_23 [1] : vector<8x8xf32> to vector<8xf32>
    %65 = vector.shape_cast %64 : vector<8xf32> to vector<8x1xf32>
    %66 = arith.truncf %63 : vector<8x8xf32> to vector<8x8xbf16>
    %cst_24 = arith.constant dense<0.000000e+00> : vector<8x8xf32>
    %67 = tpu.matmul %66, %33, %cst_24 {dimension_numbers = #tpu.dot_dimension_numbers<[1], [0], [0], [1], [0, 0, 1, 1], [], []>} : vector<8x8xbf16>, vector<8x8xbf16>, vector<8x8xf32> -> vector<8x8xf32>
    %68 = vector.broadcast %65 : vector<8x1xf32> to vector<8x8xf32>
    %69 = arith.divf %67, %68 : vector<8x8xf32>
    %70 = vector.extract_strided_slice %26 {offsets = [0, 40], sizes = [8, 8], strides = [1, 1]} : vector<8x64xf32> to vector<8x8xf32>
    %71 = arith.truncf %70 : vector<8x8xf32> to vector<8x8xbf16>
    %72 = vector.extract_strided_slice %26 {offsets = [0, 56], sizes = [8, 8], strides = [1, 1]} : vector<8x64xf32> to vector<8x8xf32>
    %73 = arith.truncf %72 : vector<8x8xf32> to vector<8x8xbf16>
    %74 = vector.extract_strided_slice %26 {offsets = [0, 16], sizes = [8, 8], strides = [1, 1]} : vector<8x64xf32> to vector<8x8xf32>
    %cst_25 = arith.constant 0.353553385 : f32
    %75 = vector.broadcast %cst_25 : f32 to vector<8x8xf32>
    %76 = arith.mulf %74, %75 : vector<8x8xf32>
    %77 = arith.truncf %76 : vector<8x8xf32> to vector<8x8xbf16>
    %cst_26 = arith.constant dense<0.000000e+00> : vector<8x8xf32>
    %78 = tpu.matmul %77, %71, %cst_26 {dimension_numbers = #tpu.dot_dimension_numbers<[1], [1], [0], [0], [0, 0, 1, 0], [], []>} : vector<8x8xbf16>, vector<8x8xbf16>, vector<8x8xf32> -> vector<8x8xf32>
    %cst_27 = arith.constant -1.000000e+30 : f32
    %79 = vector.broadcast %cst_27 : f32 to vector<8x8xf32>
    %80 = arith.select %29, %78, %79 : vector<8x8xi1>, vector<8x8xf32>
    %cst_28 = arith.constant dense<0xFF800000> : vector<8xf32>
    %81 = vector.multi_reduction <maximumf>, %80, %cst_28 [1] : vector<8x8xf32> to vector<8xf32>
    %82 = vector.shape_cast %81 : vector<8xf32> to vector<8x1xf32>
    %83 = vector.broadcast %82 : vector<8x1xf32> to vector<8x8xf32>
    %84 = arith.subf %80, %83 : vector<8x8xf32>
    %85 = math.exp %84 : vector<8x8xf32>
    %cst_29 = arith.constant dense<0.000000e+00> : vector<8xf32>
    %86 = vector.multi_reduction <add>, %85, %cst_29 [1] : vector<8x8xf32> to vector<8xf32>
    %87 = vector.shape_cast %86 : vector<8xf32> to vector<8x1xf32>
    %88 = arith.truncf %85 : vector<8x8xf32> to vector<8x8xbf16>
    %cst_30 = arith.constant dense<0.000000e+00> : vector<8x8xf32>
    %89 = tpu.matmul %88, %73, %cst_30 {dimension_numbers = #tpu.dot_dimension_numbers<[1], [0], [0], [1], [0, 0, 1, 1], [], []>} : vector<8x8xbf16>, vector<8x8xbf16>, vector<8x8xf32> -> vector<8x8xf32>
    %90 = vector.broadcast %87 : vector<8x1xf32> to vector<8x8xf32>
    %91 = arith.divf %89, %90 : vector<8x8xf32>
    %92 = vector.extract_strided_slice %26 {offsets = [0, 24], sizes = [8, 8], strides = [1, 1]} : vector<8x64xf32> to vector<8x8xf32>
    %cst_31 = arith.constant 0.353553385 : f32
    %93 = vector.broadcast %cst_31 : f32 to vector<8x8xf32>
    %94 = arith.mulf %92, %93 : vector<8x8xf32>
    %95 = arith.truncf %94 : vector<8x8xf32> to vector<8x8xbf16>
    %cst_32 = arith.constant dense<0.000000e+00> : vector<8x8xf32>
    %96 = tpu.matmul %95, %71, %cst_32 {dimension_numbers = #tpu.dot_dimension_numbers<[1], [1], [0], [0], [0, 0, 1, 0], [], []>} : vector<8x8xbf16>, vector<8x8xbf16>, vector<8x8xf32> -> vector<8x8xf32>
    %cst_33 = arith.constant -1.000000e+30 : f32
    %97 = vector.broadcast %cst_33 : f32 to vector<8x8xf32>
    %98 = arith.select %29, %96, %97 : vector<8x8xi1>, vector<8x8xf32>
    %cst_34 = arith.constant dense<0xFF800000> : vector<8xf32>
    %99 = vector.multi_reduction <maximumf>, %98, %cst_34 [1] : vector<8x8xf32> to vector<8xf32>
    %100 = vector.shape_cast %99 : vector<8xf32> to vector<8x1xf32>
    %101 = vector.broadcast %100 : vector<8x1xf32> to vector<8x8xf32>
    %102 = arith.subf %98, %101 : vector<8x8xf32>
    %103 = math.exp %102 : vector<8x8xf32>
    %cst_35 = arith.constant dense<0.000000e+00> : vector<8xf32>
    %104 = vector.multi_reduction <add>, %103, %cst_35 [1] : vector<8x8xf32> to vector<8xf32>
    %105 = vector.shape_cast %104 : vector<8xf32> to vector<8x1xf32>
    %106 = arith.truncf %103 : vector<8x8xf32> to vector<8x8xbf16>
    %cst_36 = arith.constant dense<0.000000e+00> : vector<8x8xf32>
    %107 = tpu.matmul %106, %73, %cst_36 {dimension_numbers = #tpu.dot_dimension_numbers<[1], [0], [0], [1], [0, 0, 1, 1], [], []>} : vector<8x8xbf16>, vector<8x8xbf16>, vector<8x8xf32> -> vector<8x8xf32>
    %108 = vector.broadcast %105 : vector<8x1xf32> to vector<8x8xf32>
    %109 = arith.divf %107, %108 : vector<8x8xf32>
    %110 = tpu.concatenate %51, %69, %91, %109 in 1 : vector<8x8xf32>, vector<8x8xf32>, vector<8x8xf32>, vector<8x8xf32> -> vector<8x32xf32>
    %111 = arith.truncf %110 : vector<8x32xf32> to vector<8x32xbf16>
    %c0_37 = arith.constant 0 : index
    %c0_38 = arith.constant 0 : index
    %112 = vector.load %arg5[%c0_37, %c0_38] : memref<32x32xbf16, #tpu.memory_space<vmem>>, vector<32x32xbf16>
    %cst_39 = arith.constant dense<0.000000e+00> : vector<8x32xf32>
    %113 = tpu.matmul %111, %112, %cst_39 {dimension_numbers = #tpu.dot_dimension_numbers<[1], [1], [0], [0], [0, 0, 1, 0], [], []>} : vector<8x32xbf16>, vector<32x32xbf16>, vector<8x32xf32> -> vector<8x32xf32>
    %c0_40 = arith.constant 0 : index
    %c0_41 = arith.constant 0 : index
    %114 = vector.load %arg6[%c0_40, %c0_41] : memref<1x32xf32, #tpu.memory_space<vmem>>, vector<1x32xf32>
    %115 = vector.broadcast %114 : vector<1x32xf32> to vector<8x32xf32>
    %116 = arith.addf %113, %115 : vector<8x32xf32>
    %117 = arith.addf %1, %116 : vector<8x32xf32>
    %c0_42 = arith.constant 0 : index
    %c0_43 = arith.constant 0 : index
    %118 = vector.load %arg7[%c0_42, %c0_43] : memref<1x32xf32, #tpu.memory_space<vmem>>, vector<1x32xf32>
    %c0_44 = arith.constant 0 : index
    %c0_45 = arith.constant 0 : index
    %119 = vector.load %arg8[%c0_44, %c0_45] : memref<1x32xf32, #tpu.memory_space<vmem>>, vector<1x32xf32>
    %cst_46 = arith.constant dense<0.000000e+00> : vector<8xf32>
    %120 = vector.multi_reduction <add>, %117, %cst_46 [1] : vector<8x32xf32> to vector<8xf32>
    %121 = vector.shape_cast %120 : vector<8xf32> to vector<8x1xf32>
    %cst_47 = arith.constant 3.200000e+01 : f32
    %122 = vector.broadcast %cst_47 : f32 to vector<8x1xf32>
    %123 = arith.divf %121, %122 : vector<8x1xf32>
    %124 = vector.broadcast %123 : vector<8x1xf32> to vector<8x32xf32>
    %125 = arith.subf %117, %124 : vector<8x32xf32>
    %126 = arith.mulf %125, %125 : vector<8x32xf32>
    %cst_48 = arith.constant dense<0.000000e+00> : vector<8xf32>
    %127 = vector.multi_reduction <add>, %126, %cst_48 [1] : vector<8x32xf32> to vector<8xf32>
    %128 = vector.shape_cast %127 : vector<8xf32> to vector<8x1xf32>
    %cst_49 = arith.constant 3.200000e+01 : f32
    %129 = vector.broadcast %cst_49 : f32 to vector<8x1xf32>
    %130 = arith.divf %128, %129 : vector<8x1xf32>
    %cst_50 = arith.constant 9.99999974E-6 : f32
    %131 = vector.broadcast %cst_50 : f32 to vector<8x1xf32>
    %132 = arith.addf %130, %131 : vector<8x1xf32>
    %133 = math.rsqrt %132 : vector<8x1xf32>
    %134 = vector.broadcast %133 : vector<8x1xf32> to vector<8x32xf32>
    %135 = arith.mulf %125, %134 : vector<8x32xf32>
    %136 = vector.broadcast %118 : vector<1x32xf32> to vector<8x32xf32>
    %137 = arith.mulf %135, %136 : vector<8x32xf32>
    %138 = vector.broadcast %119 : vector<1x32xf32> to vector<8x32xf32>
    %139 = arith.addf %137, %138 : vector<8x32xf32>
    %140 = arith.truncf %139 : vector<8x32xf32> to vector<8x32xbf16>
    %c0_51 = arith.constant 0 : index
    %c0_52 = arith.constant 0 : index
    %141 = vector.load %arg9[%c0_51, %c0_52] : memref<128x32xbf16, #tpu.memory_space<vmem>>, vector<128x32xbf16>
    %cst_53 = arith.constant dense<0.000000e+00> : vector<8x128xf32>
    %142 = tpu.matmul %140, %141, %cst_53 {dimension_numbers = #tpu.dot_dimension_numbers<[1], [1], [0], [0], [0, 0, 1, 0], [], []>} : vector<8x32xbf16>, vector<128x32xbf16>, vector<8x128xf32> -> vector<8x128xf32>
    %c0_54 = arith.constant 0 : index
    %c0_55 = arith.constant 0 : index
    %143 = vector.load %arg10[%c0_54, %c0_55] : memref<1x128xf32, #tpu.memory_space<vmem>>, vector<1x128xf32>
    %144 = vector.broadcast %143 : vector<1x128xf32> to vector<8x128xf32>
    %145 = arith.addf %142, %144 : vector<8x128xf32>
    %cst_56 = arith.constant 0.000000e+00 : f32
    %146 = vector.broadcast %cst_56 : f32 to vector<8x128xf32>
    %147 = arith.maximumf %145, %146 : vector<8x128xf32>
    %148 = arith.truncf %147 : vector<8x128xf32> to vector<8x128xbf16>
    %c0_57 = arith.constant 0 : index
    %c0_58 = arith.constant 0 : index
    %149 = vector.load %arg11[%c0_57, %c0_58] : memref<32x128xbf16, #tpu.memory_space<vmem>>, vector<32x128xbf16>
    %cst_59 = arith.constant dense<0.000000e+00> : vector<8x32xf32>
    %150 = tpu.matmul %148, %149, %cst_59 {dimension_numbers = #tpu.dot_dimension_numbers<[1], [1], [0], [0], [0, 0, 1, 0], [], []>} : vector<8x128xbf16>, vector<32x128xbf16>, vector<8x32xf32> -> vector<8x32xf32>
    %c0_60 = arith.constant 0 : index
    %c0_61 = arith.constant 0 : index
    %151 = vector.load %arg12[%c0_60, %c0_61] : memref<1x32xf32, #tpu.memory_space<vmem>>, vector<1x32xf32>
    %152 = vector.broadcast %151 : vector<1x32xf32> to vector<8x32xf32>
    %153 = arith.addf %150, %152 : vector<8x32xf32>
    %154 = arith.addf %117, %153 : vector<8x32xf32>
    %c0_62 = arith.constant 0 : index
    %c0_63 = arith.constant 0 : index
    %c0_64 = arith.constant 0 : index
    %155 = vector.load %arg13[%c0_62, %c0_63, %c0_64] : memref<1x8x32xf32, #tpu.memory_space<vmem>>, vector<1x8x32xf32>
    %156 = vector.shape_cast %155 : vector<1x8x32xf32> to vector<8x32xf32>
    %157 = vector.shape_cast %154 : vector<8x32xf32> to vector<1x8x32xf32>
    tpu.vector_store %arg13[%c0_62, %c0_63, %c0_64], %157 {strides = array<i32>} : memref<1x8x32xf32, #tpu.memory_space<vmem>>, vector<1x8x32xf32>,
    return
  }
  func.func @transform_0(%arg0: i32) -> (i32, i32, i32) {
    %c0_i32 = arith.constant 0 : i32
    %c0_i32_0 = arith.constant 0 : i32
    %c0_i32_1 = arith.constant 0 : i32
    return %arg0, %c0_i32, %c0_i32_0 : i32, i32, i32
  }
  func.func @transform_1(%arg0: i32) -> (i32, i32) {
    %c0_i32 = arith.constant 0 : i32
    %c0_i32_0 = arith.constant 0 : i32
    %c0_i32_1 = arith.constant 0 : i32
    return %c0_i32, %c0_i32_0 : i32, i32
  }
  func.func @transform_2(%arg0: i32) -> (i32, i32) {
    %c0_i32 = arith.constant 0 : i32
    %c0_i32_0 = arith.constant 0 : i32
    %c0_i32_1 = arith.constant 0 : i32
    return %c0_i32, %c0_i32_0 : i32, i32
  }
  func.func @transform_3(%arg0: i32) -> (i32, i32) {
    %c0_i32 = arith.constant 0 : i32
    %c0_i32_0 = arith.constant 0 : i32
    %c0_i32_1 = arith.constant 0 : i32
    return %c0_i32, %c0_i32_0 : i32, i32
  }
  func.func @transform_4(%arg0: i32) -> (i32, i32) {
    %c0_i32 = arith.constant 0 : i32
    %c0_i32_0 = arith.constant 0 : i32
    %c0_i32_1 = arith.constant 0 : i32
    return %c0_i32, %c0_i32_0 : i32, i32
  }
  func.func @transform_5(%arg0: i32) -> (i32, i32) {
    %c0_i32 = arith.constant 0 : i32
    %c0_i32_0 = arith.constant 0 : i32
    %c0_i32_1 = arith.constant 0 : i32
    return %c0_i32, %c0_i32_0 : i32, i32
  }
  func.func @transform_6(%arg0: i32) -> (i32, i32) {
    %c0_i32 = arith.constant 0 : i32
    %c0_i32_0 = arith.constant 0 : i32
    %c0_i32_1 = arith.constant 0 : i32
    return %c0_i32, %c0_i32_0 : i32, i32
  }
  func.func @transform_7(%arg0: i32) -> (i32, i32) {
    %c0_i32 = arith.constant 0 : i32
    %c0_i32_0 = arith.constant 0 : i32
    %c0_i32_1 = arith.constant 0 : i32
    return %c0_i32, %c0_i32_0 : i32, i32
  }
  func.func @transform_8(%arg0: i32) -> (i32, i32) {
    %c0_i32 = arith.constant 0 : i32
    %c0_i32_0 = arith.constant 0 : i32
    %c0_i32_1 = arith.constant 0 : i32
    return %c0_i32, %c0_i32_0 : i32, i32
  }
  func.func @transform_9(%arg0: i32) -> (i32, i32) {
    %c0_i32 = arith.constant 0 : i32
    %c0_i32_0 = arith.constant 0 : i32
    %c0_i32_1 = arith.constant 0 : i32
    return %c0_i32, %c0_i32_0 : i32, i32
  }
  func.func @transform_10(%arg0: i32) -> (i32, i32) {
    %c0_i32 = arith.constant 0 : i32
    %c0_i32_0 = arith.constant 0 : i32
    %c0_i32_1 = arith.constant 0 : i32
    return %c0_i32, %c0_i32_0 : i32, i32
  }
  func.func @transform_11(%arg0: i32) -> (i32, i32) {
    %c0_i32 = arith.constant 0 : i32
    %c0_i32_0 = arith.constant 0 : i32
    %c0_i32_1 = arith.constant 0 : i32
    return %c0_i32, %c0_i32_0 : i32, i32
  }
  func.func @transform_12(%arg0: i32) -> (i32, i32, i32) {
    %c0_i32 = arith.constant 0 : i32
    %c0_i32_0 = arith.constant 0 : i32
    %c0_i32_1 = arith.constant 0 : i32
    return %arg0, %c0_i32, %c0_i32_0 : i32, i32, i32
  }
}

</mosaic_0001>

<llo_original>
// kernel: tpu_custom_call.1
$region0: #{tpu_custom_call.1}
  #allocation0 [shape = 'u32[]', space=smem, size = 0x4, offset = 0x4, fixed_abs, tag = 'smem constant byte address 0x4 - core index']
  #allocation1 [shape = 'u32[72,128]{1,0:T(1,128)}', space=vmem, size = 0x9000, scoped, tag = 'internal scratch']
  %s0 = inlined_call_operand.vmem [shape: f32[2,8,32], index: 0, kind: input, shape index: {}]
  %s1 = inlined_call_operand.vmem [shape: f32[1,32], index: 1, kind: input, shape index: {}]
  %s2 = inlined_call_operand.vmem [shape: f32[1,32], index: 2, kind: input, shape index: {}]
  %s3 = inlined_call_operand.vmem [shape: bf16[64,32], index: 3, kind: input, shape index: {}]
  %s4 = inlined_call_operand.vmem [shape: bf16[32,32], index: 4, kind: input, shape index: {}]
  %s5 = inlined_call_operand.vmem [shape: f32[1,32], index: 5, kind: input, shape index: {}]
  %s6 = inlined_call_operand.vmem [shape: f32[1,32], index: 6, kind: input, shape index: {}]
  %s7 = inlined_call_operand.vmem [shape: f32[1,32], index: 7, kind: input, shape index: {}]
  %s8 = inlined_call_operand.vmem [shape: bf16[128,32], index: 8, kind: input, shape index: {}]
  %s9 = inlined_call_operand.vmem [shape: f32[1,128], index: 9, kind: input, shape index: {}]
  %s10 = inlined_call_operand.vmem [shape: bf16[32,128], index: 10, kind: input, shape index: {}]
  %s11 = inlined_call_operand.vmem [shape: f32[1,32], index: 11, kind: input, shape index: {}]
  %s12 = inlined_call_operand.hbm [shape: f32[2,8,32], index: 12, kind: output, shape index: {}]
  %s13 = sld [smem:[#allocation0]]
  $region81: #{tpu_custom_call.1} parent=0
    _
  %s15 = ssub.s32 1, %s13
  %s16 = scalar_select 0, %s15, %s13
  $region1: #{tpu_custom_call.1} parent=0
    #allocation2 [shape = 'u8[8192]{0}', space=vmem, size = 0x2000, scoped, tag = 'output window, operand 0']
    #allocation3 [shape = 's32[2]{0}', space=sflag, size = 0x8, scoped, tag = 'scoped memory for tpu_custom_call.1']
    %17 = vsyncpa [#allocation3], 0
    %s18 = scalar_lea.sflag [#allocation3], 1
    %19 = vsyncpa %s18, 0
    loop: start=0, step=1, limit=4
    $region2: #{tpu_custom_call.1} parent=1 // loop_pre_header
      _
    $region3: #{tpu_custom_call.1} parent=1 // loop_header
      %s21 = sphi 0, %s25
      %p22 = scmp.ge.s32.totalorder %s21, 4
      %s31 = sphi 0, %s33
      %s34 = sphi 0, %s31
      %s35 = sphi 0, %s34
      %s51 = sphi 0, %s35
      %s55 = sphi 0, %s55
      %s57 = sphi 0, %s55
      %s58 = sphi 0, %s57
      %s72 = sphi 0, %s58
      %s76 = sphi 0, %s76
      %s78 = sphi 0, %s76
      %s79 = sphi 0, %s78
      %s93 = sphi 0, %s79
      %s97 = sphi 0, %s97
      %s99 = sphi 0, %s97
      %s100 = sphi 0, %s99
      %s114 = sphi 0, %s100
      %s118 = sphi 0, %s118
      %s120 = sphi 0, %s118
      %s121 = sphi 0, %s120
      %s135 = sphi 0, %s121
      %s139 = sphi 0, %s139
      %s141 = sphi 0, %s139
      %s142 = sphi 0, %s141
      %s156 = sphi 0, %s142
      %s160 = sphi 0, %s160
      %s162 = sphi 0, %s160
      %s163 = sphi 0, %s162
      %s177 = sphi 0, %s163
      %s181 = sphi 0, %s181
      %s183 = sphi 0, %s181
      %s184 = sphi 0, %s183
      %s198 = sphi 0, %s184
      %s202 = sphi 0, %s202
      %s204 = sphi 0, %s202
      %s205 = sphi 0, %s204
      %s219 = sphi 0, %s205
      %s223 = sphi 0, %s223
      %s225 = sphi 0, %s223
      %s226 = sphi 0, %s225
      %s240 = sphi 0, %s226
      %s244 = sphi 0, %s244
      %s246 = sphi 0, %s244
      %s247 = sphi 0, %s246
      %s261 = sphi 0, %s247
      %s265 = sphi 0, %s265
      %s267 = sphi 0, %s265
      %s268 = sphi 0, %s267
      %s282 = sphi 0, %s268
      %s288 = sphi 0, %s290
      %s291 = sphi 0, %s288
      %s292 = sphi 0, %s291
      %s308 = sphi 0, %s292
    $region4: #{tpu_custom_call.1} parent=1 // loop_header_branch
      %24 = sbr.rel (%p22) target = $region8
    $region5: #{tpu_custom_call.1} parent=1 // loop_body
      %s26 = ssub.s32 %s21, 1
      %s27 = ssub.s32 %s21, 2
      %s28 = sadd.s32 %s21, 1
      %s29 = ssub.s32 %s21, %s28
      %p30 = scmp.eq.s32.totalorder %s29, 0
      %s32 = sadd.s32 %s31, 1
      %s33 = scalar_select %p30, %s31, %s32
      %p36 = pneg %p30
      %p37 = scmp.eq.s32.totalorder %s21, 1
      %p38 = por %p36, %p37
      %p39 = scmp.ne.s32.totalorder %s31, %s34
      %p40 = scmp.eq.s32.totalorder %s21, 0
      %p41 = por %p39, %p40
      %p42 = scmp.ne.s32.totalorder %s31, %s34
      %p43 = scmp.eq.s32.totalorder %s26, 1
      %p44 = por %p42, %p43
      %p45 = scmp.ne.s32.totalorder %s34, %s35
      %p46 = scmp.eq.s32.totalorder %s26, 0
      %p47 = por %p45, %p46
      %p48 = scmp.ne.s32.totalorder %s34, %s35
      %p49 = scmp.eq.s32.totalorder %s27, 1
      %p50 = por %p48, %p49
      %p52 = scmp.ne.s32.totalorder %s35, %s51
      %p53 = scmp.eq.s32.totalorder %s27, 0
      %p54 = por %p52, %p53
      %s56 = sadd.s32 %s55, 1
      %p59 = scmp.eq.s32.totalorder %s21, 1
      %p60 = scmp.ne.s32.totalorder %s55, %s57
      %p61 = scmp.eq.s32.totalorder %s21, 0
      %p62 = por %p60, %p61
      %p63 = scmp.ne.s32.totalorder %s55, %s57
      %p64 = scmp.eq.s32.totalorder %s26, 1
      %p65 = por %p63, %p64
      %p66 = scmp.ne.s32.totalorder %s57, %s58
      %p67 = scmp.eq.s32.totalorder %s26, 0
      %p68 = por %p66, %p67
      %p69 = scmp.ne.s32.totalorder %s57, %s58
      %p70 = scmp.eq.s32.totalorder %s27, 1
      %p71 = por %p69, %p70
      %p73 = scmp.ne.s32.totalorder %s58, %s72
      %p74 = scmp.eq.s32.totalorder %s27, 0
      %p75 = por %p73, %p74
      %s77 = sadd.s32 %s76, 1
      %p80 = scmp.eq.s32.totalorder %s21, 1
      %p81 = scmp.ne.s32.totalorder %s76, %s78
      %p82 = scmp.eq.s32.totalorder %s21, 0
      %p83 = por %p81, %p82
      %p84 = scmp.ne.s32.totalorder %s76, %s78
      %p85 = scmp.eq.s32.totalorder %s26, 1
      %p86 = por %p84, %p85
      %p87 = scmp.ne.s32.totalorder %s78, %s79
      %p88 = scmp.eq.s32.totalorder %s26, 0
      %p89 = por %p87, %p88
      %p90 = scmp.ne.s32.totalorder %s78, %s79
      %p91 = scmp.eq.s32.totalorder %s27, 1
      %p92 = por %p90, %p91
      %p94 = scmp.ne.s32.totalorder %s79, %s93
      %p95 = scmp.eq.s32.totalorder %s27, 0
      %p96 = por %p94, %p95
      %s98 = sadd.s32 %s97, 1
      %p101 = scmp.eq.s32.totalorder %s21, 1
      %p102 = scmp.ne.s32.totalorder %s97, %s99
      %p103 = scmp.eq.s32.totalorder %s21, 0
      %p104 = por %p102, %p103
      %p105 = scmp.ne.s32.totalorder %s97, %s99
      %p106 = scmp.eq.s32.totalorder %s26, 1
      %p107 = por %p105, %p106
      %p108 = scmp.ne.s32.totalorder %s99, %s100
      %p109 = scmp.eq.s32.totalorder %s26, 0
      %p110 = por %p108, %p109
      %p111 = scmp.ne.s32.totalorder %s99, %s100
      %p112 = scmp.eq.s32.totalorder %s27, 1
      %p113 = por %p111, %p112
      %p115 = scmp.ne.s32.totalorder %s100, %s114
      %p116 = scmp.eq.s32.totalorder %s27, 0
      %p117 = por %p115, %p116
      %s119 = sadd.s32 %s118, 1
      %p122 = scmp.eq.s32.totalorder %s21, 1
      %p123 = scmp.ne.s32.totalorder %s118, %s120
      %p124 = scmp.eq.s32.totalorder %s21, 0
      %p125 = por %p123, %p124
      %p126 = scmp.ne.s32.totalorder %s118, %s120
      %p127 = scmp.eq.s32.totalorder %s26, 1
      %p128 = por %p126, %p127
      %p129 = scmp.ne.s32.totalorder %s120, %s121
      %p130 = scmp.eq.s32.totalorder %s26, 0
      %p131 = por %p129, %p130
      %p132 = scmp.ne.s32.totalorder %s120, %s121
      %p133 = scmp.eq.s32.totalorder %s27, 1
      %p134 = por %p132, %p133
      %p136 = scmp.ne.s32.totalorder %s121, %s135
      %p137 = scmp.eq.s32.totalorder %s27, 0
      %p138 = por %p136, %p137
      %s140 = sadd.s32 %s139, 1
      %p143 = scmp.eq.s32.totalorder %s21, 1
      %p144 = scmp.ne.s32.totalorder %s139, %s141
      %p145 = scmp.eq.s32.totalorder %s21, 0
      %p146 = por %p144, %p145
      %p147 = scmp.ne.s32.totalorder %s139, %s141
      %p148 = scmp.eq.s32.totalorder %s26, 1
      %p149 = por %p147, %p148
      %p150 = scmp.ne.s32.totalorder %s141, %s142
      %p151 = scmp.eq.s32.totalorder %s26, 0
      %p152 = por %p150, %p151
      %p153 = scmp.ne.s32.totalorder %s141, %s142
      %p154 = scmp.eq.s32.totalorder %s27, 1
      %p155 = por %p153, %p154
      %p157 = scmp.ne.s32.totalorder %s142, %s156
      %p158 = scmp.eq.s32.totalorder %s27, 0
      %p159 = por %p157, %p158
      %s161 = sadd.s32 %s160, 1
      %p164 = scmp.eq.s32.totalorder %s21, 1
      %p165 = scmp.ne.s32.totalorder %s160, %s162
      %p166 = scmp.eq.s32.totalorder %s21, 0
      %p167 = por %p165, %p166
      %p168 = scmp.ne.s32.totalorder %s160, %s162
      %p169 = scmp.eq.s32.totalorder %s26, 1
      %p170 = por %p168, %p169
      %p171 = scmp.ne.s32.totalorder %s162, %s163
      %p172 = scmp.eq.s32.totalorder %s26, 0
      %p173 = por %p171, %p172
      %p174 = scmp.ne.s32.totalorder %s162, %s163
      %p175 = scmp.eq.s32.totalorder %s27, 1
      %p176 = por %p174, %p175
      %p178 = scmp.ne.s32.totalorder %s163, %s177
      %p179 = scmp.eq.s32.totalorder %s27, 0
      %p180 = por %p178, %p179
      %s182 = sadd.s32 %s181, 1
      %p185 = scmp.eq.s32.totalorder %s21, 1
      %p186 = scmp.ne.s32.totalorder %s181, %s183
      %p187 = scmp.eq.s32.totalorder %s21, 0
      %p188 = por %p186, %p187
      %p189 = scmp.ne.s32.totalorder %s181, %s183
      %p190 = scmp.eq.s32.totalorder %s26, 1
      %p191 = por %p189, %p190
      %p192 = scmp.ne.s32.totalorder %s183, %s184
      %p193 = scmp.eq.s32.totalorder %s26, 0
      %p194 = por %p192, %p193
      %p195 = scmp.ne.s32.totalorder %s183, %s184
      %p196 = scmp.eq.s32.totalorder %s27, 1
      %p197 = por %p195, %p196
      %p199 = scmp.ne.s32.totalorder %s184, %s198
      %p200 = scmp.eq.s32.totalorder %s27, 0
      %p201 = por %p199, %p200
      %s203 = sadd.s32 %s202, 1
      %p206 = scmp.eq.s32.totalorder %s21, 1
      %p207 = scmp.ne.s32.totalorder %s202, %s204
      %p208 = scmp.eq.s32.totalorder %s21, 0
      %p209 = por %p207, %p208
      %p210 = scmp.ne.s32.totalorder %s202, %s204
      %p211 = scmp.eq.s32.totalorder %s26, 1
      %p212 = por %p210, %p211
      %p213 = scmp.ne.s32.totalorder %s204, %s205
      %p214 = scmp.eq.s32.totalorder %s26, 0
      %p215 = por %p213, %p214
      %p216 = scmp.ne.s32.totalorder %s204, %s205
      %p217 = scmp.eq.s32.totalorder %s27, 1
      %p218 = por %p216, %p217
      %p220 = scmp.ne.s32.totalorder %s205, %s219
      %p221 = scmp.eq.s32.totalorder %s27, 0
      %p222 = por %p220, %p221
      %s224 = sadd.s32 %s223, 1
      %p227 = scmp.eq.s32.totalorder %s21, 1
      %p228 = scmp.ne.s32.totalorder %s223, %s225
      %p229 = scmp.eq.s32.totalorder %s21, 0
      %p230 = por %p228, %p229
      %p231 = scmp.ne.s32.totalorder %s223, %s225
      %p232 = scmp.eq.s32.totalorder %s26, 1
      %p233 = por %p231, %p232
      %p234 = scmp.ne.s32.totalorder %s225, %s226
      %p235 = scmp.eq.s32.totalorder %s26, 0
      %p236 = por %p234, %p235
      %p237 = scmp.ne.s32.totalorder %s225, %s226
      %p238 = scmp.eq.s32.totalorder %s27, 1
      %p239 = por %p237, %p238
      %p241 = scmp.ne.s32.totalorder %s226, %s240
      %p242 = scmp.eq.s32.totalorder %s27, 0
      %p243 = por %p241, %p242
      %s245 = sadd.s32 %s244, 1
      %p248 = scmp.eq.s32.totalorder %s21, 1
      %p249 = scmp.ne.s32.totalorder %s244, %s246
      %p250 = scmp.eq.s32.totalorder %s21, 0
      %p251 = por %p249, %p250
      %p252 = scmp.ne.s32.totalorder %s244, %s246
      %p253 = scmp.eq.s32.totalorder %s26, 1
      %p254 = por %p252, %p253
      %p255 = scmp.ne.s32.totalorder %s246, %s247
      %p256 = scmp.eq.s32.totalorder %s26, 0
      %p257 = por %p255, %p256
      %p258 = scmp.ne.s32.totalorder %s246, %s247
      %p259 = scmp.eq.s32.totalorder %s27, 1
      %p260 = por %p258, %p259
      %p262 = scmp.ne.s32.totalorder %s247, %s261
      %p263 = scmp.eq.s32.totalorder %s27, 0
      %p264 = por %p262, %p263
      %s266 = sadd.s32 %s265, 1
      %p269 = scmp.eq.s32.totalorder %s21, 1
      %p270 = scmp.ne.s32.totalorder %s265, %s267
      %p271 = scmp.eq.s32.totalorder %s21, 0
      %p272 = por %p270, %p271
      %p273 = scmp.ne.s32.totalorder %s265, %s267
      %p274 = scmp.eq.s32.totalorder %s26, 1
      %p275 = por %p273, %p274
      %p276 = scmp.ne.s32.totalorder %s267, %s268
      %p277 = scmp.eq.s32.totalorder %s26, 0
      %p278 = por %p276, %p277
      %p279 = scmp.ne.s32.totalorder %s267, %s268
      %p280 = scmp.eq.s32.totalorder %s27, 1
      %p281 = por %p279, %p280
      %p283 = scmp.ne.s32.totalorder %s268, %s282
      %p284 = scmp.eq.s32.totalorder %s27, 0
      %p285 = por %p283, %p284
      %s286 = ssub.s32 %s21, %s28
      %p287 = scmp.eq.s32.totalorder %s286, 0
      %s289 = sadd.s32 %s288, 1
      %s290 = scalar_select %p287, %s288, %s289
      %p293 = pneg %p287
      %p294 = scmp.eq.s32.totalorder %s21, 1
      %p295 = por %p293, %p294
      %p296 = scmp.ne.s32.totalorder %s288, %s291
      %p297 = scmp.eq.s32.totalorder %s21, 0
      %p298 = por %p296, %p297
      %p299 = scmp.ne.s32.totalorder %s288, %s291
      %p300 = scmp.eq.s32.totalorder %s26, 1
      %p301 = por %p299, %p300
      %p302 = scmp.ne.s32.totalorder %s291, %s292
      %p303 = scmp.eq.s32.totalorder %s26, 0
      %p304 = por %p302, %p303
      %p305 = scmp.ne.s32.totalorder %s291, %s292
      %p306 = scmp.eq.s32.totalorder %s27, 1
      %p307 = por %p305, %p306
      %p309 = scmp.ne.s32.totalorder %s292, %s308
      %p310 = scmp.eq.s32.totalorder %s27, 0
      %p311 = por %p309, %p310
      %p312 = scmp.le.s32.totalorder 1, %s21
      %p313 = scmp.lt.s32.totalorder %s21, 3
      %p314 = pnand %p312, %p313
      %p315 = pneg %p314
      // Predicated region
      $region9: #{tpu_custom_call.1} parent=5 // pred_check
        _
      $region10: #{tpu_custom_call.1} parent=5 // pred_check_branch
        %317 = sbr.rel (%p314) target = $region12
      $region11: #{tpu_custom_call.1} parent=5 // pred_region
        %s318 = ssub.s32 %s21, 1
        // Predicated region
        $region13: #{tpu_custom_call.1} parent=11 // pred_check
          %p319 = pneg %p68
        $region14: #{tpu_custom_call.1} parent=11 // pred_check_branch
          %321 = sbr.rel (%p319) target = $region16
        $region15: #{tpu_custom_call.1} parent=11 // pred_region
          _
        $region16: #{tpu_custom_call.1} parent=11 // pred_fallthru
          _
        // Predicated region
        $region17: #{tpu_custom_call.1} parent=11 // pred_check
          %p322 = pneg %p89
        $region18: #{tpu_custom_call.1} parent=11 // pred_check_branch
          %324 = sbr.rel (%p322) target = $region20
        $region19: #{tpu_custom_call.1} parent=11 // pred_region
          _
        $region20: #{tpu_custom_call.1} parent=11 // pred_fallthru
          _
        // Predicated region
        $region21: #{tpu_custom_call.1} parent=11 // pred_check
          %p325 = pneg %p110
        $region22: #{tpu_custom_call.1} parent=11 // pred_check_branch
          %327 = sbr.rel (%p325) target = $region24
        $region23: #{tpu_custom_call.1} parent=11 // pred_region
          _
        $region24: #{tpu_custom_call.1} parent=11 // pred_fallthru
          _
        // Predicated region
        $region25: #{tpu_custom_call.1} parent=11 // pred_check
          %p328 = pneg %p131
        $region26: #{tpu_custom_call.1} parent=11 // pred_check_branch
          %330 = sbr.rel (%p328) target = $region28
        $region27: #{tpu_custom_call.1} parent=11 // pred_region
          _
        $region28: #{tpu_custom_call.1} parent=11 // pred_fallthru
          _
        // Predicated region
        $region29: #{tpu_custom_call.1} parent=11 // pred_check
          %p331 = pneg %p152
        $region30: #{tpu_custom_call.1} parent=11 // pred_check_branch
          %333 = sbr.rel (%p331) target = $region32
        $region31: #{tpu_custom_call.1} parent=11 // pred_region
          _
        $region32: #{tpu_custom_call.1} parent=11 // pred_fallthru
          _
        // Predicated region
        $region33: #{tpu_custom_call.1} parent=11 // pred_check
          %p334 = pneg %p173
        $region34: #{tpu_custom_call.1} parent=11 // pred_check_branch
          %336 = sbr.rel (%p334) target = $region36
        $region35: #{tpu_custom_call.1} parent=11 // pred_region
          _
        $region36: #{tpu_custom_call.1} parent=11 // pred_fallthru
          _
        // Predicated region
        $region37: #{tpu_custom_call.1} parent=11 // pred_check
          %p337 = pneg %p194
        $region38: #{tpu_custom_call.1} parent=11 // pred_check_branch
          %339 = sbr.rel (%p337) target = $region40
        $region39: #{tpu_custom_call.1} parent=11 // pred_region
          _
        $region40: #{tpu_custom_call.1} parent=11 // pred_fallthru
          _
        // Predicated region
        $region41: #{tpu_custom_call.1} parent=11 // pred_check
          %p340 = pneg %p215
        $region42: #{tpu_custom_call.1} parent=11 // pred_check_branch
          %342 = sbr.rel (%p340) target = $region44
        $region43: #{tpu_custom_call.1} parent=11 // pred_region
          _
        $region44: #{tpu_custom_call.1} parent=11 // pred_fallthru
          _
        // Predicated region
        $region45: #{tpu_custom_call.1} parent=11 // pred_check
          %p343 = pneg %p236
        $region46: #{tpu_custom_call.1} parent=11 // pred_check_branch
          %345 = sbr.rel (%p343) target = $region48
        $region47: #{tpu_custom_call.1} parent=11 // pred_region
          _
        $region48: #{tpu_custom_call.1} parent=11 // pred_fallthru
          _
        // Predicated region
        $region49: #{tpu_custom_call.1} parent=11 // pred_check
          %p346 = pneg %p257
        $region50: #{tpu_custom_call.1} parent=11 // pred_check_branch
          %348 = sbr.rel (%p346) target = $region52
        $region51: #{tpu_custom_call.1} parent=11 // pred_region
          _
        $region52: #{tpu_custom_call.1} parent=11 // pred_fallthru
          _
        // Predicated region
        $region53: #{tpu_custom_call.1} parent=11 // pred_check
          %p349 = pneg %p278
        $region54: #{tpu_custom_call.1} parent=11 // pred_check_branch
          %351 = sbr.rel (%p349) target = $region56
        $region55: #{tpu_custom_call.1} parent=11 // pred_region
          _
        $region56: #{tpu_custom_call.1} parent=11 // pred_fallthru
          _
      $region12: #{tpu_custom_call.1} parent=5 // pred_fallthru
        _
      %p352 = scmp.lt.s32.totalorder %s21, 2
      // Predicated region
      $region57: #{tpu_custom_call.1} parent=5 // pred_check
        %p353 = pneg %p352
      $region58: #{tpu_custom_call.1} parent=5 // pred_check_branch
        %355 = sbr.rel (%p353) target = $region60
      $region59: #{tpu_custom_call.1} parent=5 // pred_region
        // Predicated region
        $region61: #{tpu_custom_call.1} parent=59 // pred_check
          %p356 = pneg %p41
        $region62: #{tpu_custom_call.1} parent=59 // pred_check_branch
          %358 = sbr.rel (%p356) target = $region64
        $region63: #{tpu_custom_call.1} parent=59 // pred_region
          %p359 = scmp.lt.s32.totalorder %s21, 1
          %s360 = scalar_select %p359, %s21, 1
          %s361 = smul.addr %s360, 8
          %s362 = scalar_lea.vmem %s0, %s361
        $region64: #{tpu_custom_call.1} parent=59 // pred_fallthru
          _
      $region60: #{tpu_custom_call.1} parent=5 // pred_fallthru
        _
      %p363 = scmp.le.s32.totalorder 1, %s21
      %p364 = scmp.lt.s32.totalorder %s21, 3
      %p365 = pnand %p363, %p364
      %p366 = pneg %p365
      // Predicated region
      $region65: #{tpu_custom_call.1} parent=5 // pred_check
        _
      $region66: #{tpu_custom_call.1} parent=5 // pred_check_branch
        %368 = sbr.rel (%p365) target = $region68
      $region67: #{tpu_custom_call.1} parent=5 // pred_region
        %s369 = ssub.s32 %s21, 1
        %p370 = scmp.lt.s32.totalorder %s26, 1
        %s371 = scalar_select %p370, %s26, 1
        %s372 = smul.addr %s371, 8
        %s373 = scalar_lea.vmem %s0, %s372
        %p374 = pneg %p47
        %p375 = pneg %p44
        %p376 = pneg %p68
        %p377 = pneg %p65
        %p378 = pneg %p89
        %p379 = pneg %p86
        %p380 = pneg %p110
        %p381 = pneg %p107
        %p382 = pneg %p131
        %p383 = pneg %p128
        %p384 = pneg %p152
        %p385 = pneg %p149
        %p386 = pneg %p173
        %p387 = pneg %p170
        %p388 = pneg %p194
        %p389 = pneg %p191
        %p390 = pneg %p215
        %p391 = pneg %p212
        %p392 = pneg %p236
        %p393 = pneg %p233
        %p394 = pneg %p257
        %p395 = pneg %p254
        %p396 = pneg %p278
        %p397 = pneg %p275
        %p398 = pneg %p304
        %p399 = pneg %p301
        %s400 = sand.u32 %s291, 1
        %s401 = scalar_lea.sflag [#allocation3], %s400
        %s402 = sand.u32 %s291, 1
        %s403 = smul.addr %s402, 8
        %s404 = scalar_lea.vmem [#allocation2], %s403
        %p405 = scmp.lt.s32.totalorder %s26, 1
        %s406 = scalar_select %p405, %s26, 1
        %s407 = smul.addr %s406, 8
        %s408 = scalar_lea.vmem %s0, %s407
        %v410 = vld [vmem:[%s408] sm:$0xff]
        %v411 = vld [vmem:[%s1] sm:$0x1]
        %v412 = vld [vmem:[%s2] sm:$0x1]
        %vm413 = vcmask 261120
        %v414 = vsel %vm413, %v410, 0.0
        %415 = vadd.xlane.f32.xlu0 %v414
        %v416 = vpop.xlane.xlu0 %415
        %v417 = vrcp.pop 32.0
        %v418 = vmul.f32 32.0, %v417
        %v419 = vsub.f32 1.0, %v418
        %v420 = vmul.f32 %v417, %v419
        %v421 = vadd.f32 %v417, %v420
        %vm422 = vweird.f32 %v417
        %v423 = vsel %vm422, %v417, %v421
        %v424 = vmul.f32 %v416, %v423
        %v425 = vsub.f32 %v410, %v424
        %v426 = vmul.f32 %v425, %v425
        %v427 = vsel %vm413, %v426, 0.0
        %428 = vadd.xlane.f32.xlu0 %v427
        %v429 = vpop.xlane.xlu0 %428
        %v430 = vmul.f32 %v429, %v423
        %v431 = vadd.f32 %v430, 1e-05
        %v432 = vrsqrt.pop %v431
        %v433 = vmul.f32 %v432, %v431
        %v434 = vmul.f32 %v433, %v432
        %v435 = vmul.f32 0.5, %v434
        %v436 = vsub.f32 1.5, %v435
        %v437 = vmul.f32 %v432, %v436
        %vm438 = vweird.f32 %v431
        %vm439 = vweird.f32 %v432
        %vm440 = vmor %vm438, %vm439
        %v441 = vsel %vm440, %v432, %v437
        %v442 = vmul.f32 %v425, %v441
        %v444 = vperm.slane %v411, 0
        %v446 = vmul.f32 %v442, %v444
        %v448 = vperm.slane %v412, 0
        %v450 = vadd.f32 %v446, %v448
        %v451 = vpack.c.bf16 %v450, %v450
        %v452 = vld [vmem:[%s3] sm:$0xf]
        %v453 = vld [vmem:[%s3 + $0x4] sm:$0xf]
        %v454 = vld [vmem:[%s3 + $0x8] sm:$0xf]
        %v455 = vld [vmem:[%s3 + $0xc] sm:$0xf]
        %v456 = vld [vmem:[%s3 + $0x10] sm:$0xf]
        %v457 = vld [vmem:[%s3 + $0x14] sm:$0xf]
        %v458 = vld [vmem:[%s3 + $0x18] sm:$0xf]
        %v459 = vld [vmem:[%s3 + $0x1c] sm:$0xf]
        %v468 = vunpack.c.l.b16 %v452
        %v469 = vunpack.c.l.b16 %v453
        %v470 = vunpack.c.l.b16 %v454
        %v471 = vunpack.c.l.b16 %v455
        %v472 = vunpack.c.l.b16 %v456
        %v473 = vunpack.c.l.b16 %v457
        %v474 = vunpack.c.l.b16 %v458
        %v475 = vunpack.c.l.b16 %v459
        %v476 = vpack.c.b16 %v469, %v468
        %v477 = vpack.c.b16 %v471, %v470
        %v478 = vpack.c.b16 %v473, %v472
        %v479 = vpack.c.b16 %v475, %v474
        %v481 = vsel %vm413, %v451, 0
        %v484 = vsel %vm413, %v476, 0
        %v487 = vsel %vm413, %v477, 0
        %v490 = vsel %vm413, %v478, 0
        %v493 = vsel %vm413, %v479, 0
        %495 = vmatpush.bf16.xpose.msra.mxu0 0
        %496 = vmatpush.bf16.xpose.msra.mxu0 0
        %497 = vmatpush.bf16.xpose.msra.mxu0 0
        %498 = vmatpush.bf16.xpose.msra.mxu0 0
        %499 = vmatpush.bf16.xpose.msra.mxu0 %v493
        %500 = vmatpush.bf16.xpose.msra.mxu0 %v490
        %501 = vmatpush.bf16.xpose.msra.mxu0 %v487
        %502 = vmatpush.bf16.xpose.msra.mxu0 %v484
        %503 = vmatmul.bf16.gmra.mxu0 %v481
        %v504 = vpop.f32.mrf.mxu0
        %v505 = vadd.f32 0.0, %v504
        %v506 = vpop.f32.mrf.mxu0
        %507 = vdwg.mxu0
        %v508 = vlaneseq
        %v509 = vshrl.u32 %v508, 7
        %v510 = vlaneseq
        %v511 = vand.u32 %v510, 127
        %vm512 = vcmp.ge.s32.totalorder %v509, %v511
        %v513 = vpack.c.bf16 %v505, %v505
        %v514 = vmul.f32 %v505, 0.35355338
        %v515 = vpack.c.bf16 %v514, %v514
        %517 = vrot.lane.b32.xlu0 %v513, 96
        %v518 = vpop.permute.xlu0 %517
        %vm519 = vcmask 64512
        %v521 = vsel %vm519, %v515, 0
        %v524 = vsel %vm519, %v518, 0
        %526 = vmatpush.bf16.xpose.msra.mxu0 0
        %527 = vmatpush.bf16.xpose.msra.mxu0 0
        %528 = vmatpush.bf16.xpose.msra.mxu0 0
        %529 = vmatpush.bf16.xpose.msra.mxu0 0
        %530 = vmatpush.bf16.xpose.msra.mxu0 0
        %531 = vmatpush.bf16.xpose.msra.mxu0 0
        %532 = vmatpush.bf16.xpose.msra.mxu0 0
        %533 = vmatpush.bf16.xpose.msra.mxu0 %v524
        %534 = vmatmul.bf16.gmra.mxu0 %v521
        %v535 = vpop.f32.mrf.mxu0
        %v536 = vadd.f32 0.0, %v535
        %v537 = vpop.f32.mrf.mxu0
        %538 = vdwg.mxu0
        %v539 = vsel %vm512, %v536, -1e+30
        %v540 = vsel %vm519, %v539, -inf
        %541 = vmax.xlane.f32.xlu0 %v540
        %v542 = vpop.xlane.xlu0 %541
        %v543 = vsub.f32 %v539, %v542
        %v544 = vmul.f32 %v543, 1.442695
        %v545 = vpow.pop %v544
        %v546 = vsel %vm519, %v545, 0.0
        %547 = vadd.xlane.f32.xlu0 %v546
        %v548 = vpop.xlane.xlu0 %547
        %v549 = vpack.c.bf16 %v545, %v545
        %550 = vrot.lane.b32.xlu0 %v513, 80
        %v551 = vpop.permute.xlu0 %550
        %v553 = vsel %vm519, %v549, 0
        %vm555 = vcmask 1043456
        %v557 = vsel %vm555, %v551, 0
        %559 = vmatpush.bf16.msra.mxu0 0
        %560 = vmatpush.bf16.msra.mxu0 0
        %561 = vmatpush.bf16.msra.mxu0 0
        %562 = vmatpush.bf16.msra.mxu0 0
        %563 = vmatpush.bf16.msra.mxu0 0
        %564 = vmatpush.bf16.msra.mxu0 0
        %565 = vmatpush.bf16.msra.mxu0 0
        %566 = vmatpush.bf16.msra.mxu0 %v557
        %567 = vmatmul.bf16.gmra.mxu0 %v553
        %v568 = vpop.f32.mrf.mxu0
        %v569 = vadd.f32 0.0, %v568
        %v570 = vpop.f32.mrf.mxu0
        %571 = vdwg.mxu0
        %v572 = vrcp.pop %v548
        %v573 = vmul.f32 %v548, %v572
        %v574 = vsub.f32 1.0, %v573
        %v575 = vmul.f32 %v572, %v574
        %v576 = vadd.f32 %v572, %v575
        %vm577 = vweird.f32 %v548
        %vm578 = vweird.f32 %v572
        %vm579 = vmor %vm577, %vm578
        %v580 = vsel %vm579, %v572, %v576
        %v581 = vand.u32 2147483647, %v548
        %vm582 = vcmp.eq.f32.partialorder %v581, 8.507059e+37
        %v583 = vand.u32 %v548, 2147483648
        %v584 = vor.u32 1.1754944e-38, %v583
        %v585 = vsel %vm582, %v584, %v580
        %v586 = vmul.f32 %v569, %v585
        %588 = vrot.lane.b32.xlu0 %v515, 120
        %v589 = vpop.permute.xlu0 %588
        %v591 = vsel %vm519, %v589, 0
        %593 = vmatpush.bf16.xpose.msra.mxu0 0
        %594 = vmatpush.bf16.xpose.msra.mxu0 0
        %595 = vmatpush.bf16.xpose.msra.mxu0 0
        %596 = vmatpush.bf16.xpose.msra.mxu0 0
        %597 = vmatpush.bf16.xpose.msra.mxu0 0
        %598 = vmatpush.bf16.xpose.msra.mxu0 0
        %599 = vmatpush.bf16.xpose.msra.mxu0 0
        %600 = vmatpush.bf16.xpose.msra.mxu0 %v524
        %601 = vmatmul.bf16.gmra.mxu0 %v591
        %v602 = vpop.f32.mrf.mxu0
        %v603 = vadd.f32 0.0, %v602
        %v604 = vpop.f32.mrf.mxu0
        %605 = vdwg.mxu0
        %v606 = vsel %vm512, %v603, -1e+30
        %v607 = vsel %vm519, %v606, -inf
        %608 = vmax.xlane.f32.xlu0 %v607
        %v609 = vpop.xlane.xlu0 %608
        %v610 = vsub.f32 %v606, %v609
        %v611 = vmul.f32 %v610, 1.442695
        %v612 = vpow.pop %v611
        %v613 = vsel %vm519, %v612, 0.0
        %614 = vadd.xlane.f32.xlu0 %v613
        %v615 = vpop.xlane.xlu0 %614
        %v616 = vpack.c.bf16 %v612, %v612
        %v618 = vsel %vm519, %v616, 0
        %620 = vmatpush.bf16.msra.mxu0 0
        %621 = vmatpush.bf16.msra.mxu0 0
        %622 = vmatpush.bf16.msra.mxu0 0
        %623 = vmatpush.bf16.msra.mxu0 0
        %624 = vmatpush.bf16.msra.mxu0 0
        %625 = vmatpush.bf16.msra.mxu0 0
        %626 = vmatpush.bf16.msra.mxu0 0
        %627 = vmatpush.bf16.msra.mxu0 %v557
        %628 = vmatmul.bf16.gmra.mxu0 %v618
        %v629 = vpop.f32.mrf.mxu0
        %v630 = vadd.f32 0.0, %v629
        %v631 = vpop.f32.mrf.mxu0
        %632 = vdwg.mxu0
        %v633 = vrcp.pop %v615
        %v634 = vmul.f32 %v615, %v633
        %v635 = vsub.f32 1.0, %v634
        %v636 = vmul.f32 %v633, %v635
        %v637 = vadd.f32 %v633, %v636
        %vm638 = vweird.f32 %v615
        %vm639 = vweird.f32 %v633
        %vm640 = vmor %vm638, %vm639
        %v641 = vsel %vm640, %v633, %v637
        %v642 = vand.u32 2147483647, %v615
        %vm643 = vcmp.eq.f32.partialorder %v642, 8.507059e+37
        %v644 = vand.u32 %v615, 2147483648
        %v645 = vor.u32 1.1754944e-38, %v644
        %v646 = vsel %vm643, %v645, %v641
        %v647 = vmul.f32 %v630, %v646
        %648 = vrot.lane.b32.xlu0 %v515, 112
        %v649 = vpop.permute.xlu0 %648
        %650 = vrot.lane.b32.xlu0 %v513, 88
        %v651 = vpop.permute.xlu0 %650
        %v653 = vsel %vm519, %v649, 0
        %v656 = vsel %vm519, %v651, 0
        %658 = vmatpush.bf16.xpose.msra.mxu0 0
        %659 = vmatpush.bf16.xpose.msra.mxu0 0
        %660 = vmatpush.bf16.xpose.msra.mxu0 0
        %661 = vmatpush.bf16.xpose.msra.mxu0 0
        %662 = vmatpush.bf16.xpose.msra.mxu0 0
        %663 = vmatpush.bf16.xpose.msra.mxu0 0
        %664 = vmatpush.bf16.xpose.msra.mxu0 0
        %665 = vmatpush.bf16.xpose.msra.mxu0 %v656
        %666 = vmatmul.bf16.gmra.mxu0 %v653
        %v667 = vpop.f32.mrf.mxu0
        %v668 = vadd.f32 0.0, %v667
        %v669 = vpop.f32.mrf.mxu0
        %670 = vdwg.mxu0
        %v671 = vsel %vm512, %v668, -1e+30
        %v672 = vsel %vm519, %v671, -inf
        %673 = vmax.xlane.f32.xlu0 %v672
        %v674 = vpop.xlane.xlu0 %673
        %v675 = vsub.f32 %v671, %v674
        %v676 = vmul.f32 %v675, 1.442695
        %v677 = vpow.pop %v676
        %v678 = vsel %vm519, %v677, 0.0
        %679 = vadd.xlane.f32.xlu0 %v678
        %v680 = vpop.xlane.xlu0 %679
        %v681 = vpack.c.bf16 %v677, %v677
        %682 = vrot.lane.b32.xlu0 %v513, 72
        %v683 = vpop.permute.xlu0 %682
        %v685 = vsel %vm519, %v681, 0
        %v688 = vsel %vm555, %v683, 0
        %690 = vmatpush.bf16.msra.mxu0 0
        %691 = vmatpush.bf16.msra.mxu0 0
        %692 = vmatpush.bf16.msra.mxu0 0
        %693 = vmatpush.bf16.msra.mxu0 0
        %694 = vmatpush.bf16.msra.mxu0 0
        %695 = vmatpush.bf16.msra.mxu0 0
        %696 = vmatpush.bf16.msra.mxu0 0
        %697 = vmatpush.bf16.msra.mxu0 %v688
        %698 = vmatmul.bf16.gmra.mxu0 %v685
        %v699 = vpop.f32.mrf.mxu0
        %v700 = vadd.f32 0.0, %v699
        %v701 = vpop.f32.mrf.mxu0
        %702 = vdwg.mxu0
        %v703 = vrcp.pop %v680
        %v704 = vmul.f32 %v680, %v703
        %v705 = vsub.f32 1.0, %v704
        %v706 = vmul.f32 %v703, %v705
        %v707 = vadd.f32 %v703, %v706
        %vm708 = vweird.f32 %v680
        %vm709 = vweird.f32 %v703
        %vm710 = vmor %vm708, %vm709
        %v711 = vsel %vm710, %v703, %v707
        %v712 = vand.u32 2147483647, %v680
        %vm713 = vcmp.eq.f32.partialorder %v712, 8.507059e+37
        %v714 = vand.u32 %v680, 2147483648
        %v715 = vor.u32 1.1754944e-38, %v714
        %v716 = vsel %vm713, %v715, %v711
        %v717 = vmul.f32 %v700, %v716
        %718 = vrot.lane.b32.xlu0 %v515, 104
        %v719 = vpop.permute.xlu0 %718
        %v721 = vsel %vm519, %v719, 0
        %723 = vmatpush.bf16.xpose.msra.mxu0 0
        %724 = vmatpush.bf16.xpose.msra.mxu0 0
        %725 = vmatpush.bf16.xpose.msra.mxu0 0
        %726 = vmatpush.bf16.xpose.msra.mxu0 0
        %727 = vmatpush.bf16.xpose.msra.mxu0 0
        %728 = vmatpush.bf16.xpose.msra.mxu0 0
        %729 = vmatpush.bf16.xpose.msra.mxu0 0
        %730 = vmatpush.bf16.xpose.msra.mxu0 %v656
        %731 = vmatmul.bf16.gmra.mxu0 %v721
        %v732 = vpop.f32.mrf.mxu0
        %v733 = vadd.f32 0.0, %v732
        %v734 = vpop.f32.mrf.mxu0
        %735 = vdwg.mxu0
        %v736 = vsel %vm512, %v733, -1e+30
        %v737 = vsel %vm519, %v736, -inf
        %738 = vmax.xlane.f32.xlu0 %v737
        %v739 = vpop.xlane.xlu0 %738
        %v740 = vsub.f32 %v736, %v739
        %v741 = vmul.f32 %v740, 1.442695
        %v742 = vpow.pop %v741
        %v743 = vsel %vm519, %v742, 0.0
        %744 = vadd.xlane.f32.xlu0 %v743
        %v745 = vpop.xlane.xlu0 %744
        %v746 = vpack.c.bf16 %v742, %v742
        %v748 = vsel %vm519, %v746, 0
        %750 = vmatpush.bf16.msra.mxu0 0
        %751 = vmatpush.bf16.msra.mxu0 0
        %752 = vmatpush.bf16.msra.mxu0 0
        %753 = vmatpush.bf16.msra.mxu0 0
        %754 = vmatpush.bf16.msra.mxu0 0
        %755 = vmatpush.bf16.msra.mxu0 0
        %756 = vmatpush.bf16.msra.mxu0 0
        %757 = vmatpush.bf16.msra.mxu0 %v688
        %758 = vmatmul.bf16.gmra.mxu0 %v748
        %v759 = vpop.f32.mrf.mxu0
        %v760 = vadd.f32 0.0, %v759
        %v761 = vpop.f32.mrf.mxu0
        %762 = vdwg.mxu0
        %v763 = vrcp.pop %v745
        %v764 = vmul.f32 %v745, %v763
        %v765 = vsub.f32 1.0, %v764
        %v766 = vmul.f32 %v763, %v765
        %v767 = vadd.f32 %v763, %v766
        %vm768 = vweird.f32 %v745
        %vm769 = vweird.f32 %v763
        %vm770 = vmor %vm768, %vm769
        %v771 = vsel %vm770, %v763, %v767
        %v772 = vand.u32 2147483647, %v745
        %vm773 = vcmp.eq.f32.partialorder %v772, 8.507059e+37
        %v774 = vand.u32 %v745, 2147483648
        %v775 = vor.u32 1.1754944e-38, %v774
        %v776 = vsel %vm773, %v775, %v771
        %v777 = vmul.f32 %v760, %v776
        %779 = vrot.lane.b32.xlu0 %v647, 8
        %v780 = vpop.permute.xlu0 %779
        %783 = vrot.lane.b32.xlu0 %v717, 16
        %v784 = vpop.permute.xlu0 %783
        %787 = vrot.lane.b32.xlu0 %v777, 24
        %v788 = vpop.permute.xlu0 %787
        %v790 = vsel %vm519, %v586, %v780
        %vm791 = vcmask 130048
        %v792 = vsel %vm791, %v790, %v784
        %vm793 = vcmask 195584
        %v794 = vsel %vm793, %v792, %v788
        %v795 = vpack.c.bf16 %v794, %v794
        %v796 = vld [vmem:[%s4] sm:$0xf]
        %v797 = vld [vmem:[%s4 + $0x4] sm:$0xf]
        %v798 = vld [vmem:[%s4 + $0x8] sm:$0xf]
        %v799 = vld [vmem:[%s4 + $0xc] sm:$0xf]
        %v800 = vld [vmem:[%s5] sm:$0x1]
        %v802 = vperm.slane %v800, 0
        %v808 = vunpack.c.l.b16 %v796
        %v809 = vunpack.c.l.b16 %v797
        %v810 = vunpack.c.l.b16 %v798
        %v811 = vunpack.c.l.b16 %v799
        %v812 = vpack.c.b16 %v809, %v808
        %v813 = vpack.c.b16 %v811, %v810
        %v815 = vsel %vm413, %v795, 0
        %v818 = vsel %vm413, %v812, 0
        %v821 = vsel %vm413, %v813, 0
        %823 = vmatpush.bf16.xpose.msra.mxu0 0
        %824 = vmatpush.bf16.xpose.msra.mxu0 0
        %825 = vmatpush.bf16.xpose.msra.mxu0 0
        %826 = vmatpush.bf16.xpose.msra.mxu0 0
        %827 = vmatpush.bf16.xpose.msra.mxu0 0
        %828 = vmatpush.bf16.xpose.msra.mxu0 0
        %829 = vmatpush.bf16.xpose.msra.mxu0 %v821
        %830 = vmatpush.bf16.xpose.msra.mxu0 %v818
        %831 = vmatmul.bf16.gmra.mxu0 %v815
        %v832 = vpop.f32.mrf.mxu0
        %v833 = vadd.f32 %v802, %v832
        %v834 = vpop.f32.mrf.mxu0
        %835 = vdwg.mxu0
        %v836 = vadd.f32 %v410, %v833
        %v837 = vld [vmem:[%s6] sm:$0x1]
        %v838 = vld [vmem:[%s7] sm:$0x1]
        %v839 = vsel %vm413, %v836, 0.0
        %840 = vadd.xlane.f32.xlu0 %v839
        %v841 = vpop.xlane.xlu0 %840
        %v842 = vmul.f32 %v841, %v423
        %v843 = vsub.f32 %v836, %v842
        %v844 = vmul.f32 %v843, %v843
        %v845 = vsel %vm413, %v844, 0.0
        %846 = vadd.xlane.f32.xlu0 %v845
        %v847 = vpop.xlane.xlu0 %846
        %v848 = vmul.f32 %v847, %v423
        %v849 = vadd.f32 %v848, 1e-05
        %v850 = vrsqrt.pop %v849
        %v851 = vmul.f32 %v850, %v849
        %v852 = vmul.f32 %v851, %v850
        %v853 = vmul.f32 0.5, %v852
        %v854 = vsub.f32 1.5, %v853
        %v855 = vmul.f32 %v850, %v854
        %vm856 = vweird.f32 %v849
        %vm857 = vweird.f32 %v850
        %vm858 = vmor %vm856, %vm857
        %v859 = vsel %vm858, %v850, %v855
        %v860 = vmul.f32 %v843, %v859
        %v862 = vperm.slane %v837, 0
        %v864 = vmul.f32 %v860, %v862
        %v866 = vperm.slane %v838, 0
        %v868 = vadd.f32 %v864, %v866
        %v869 = vpack.c.bf16 %v868, %v868
        %v870 = vld [vmem:[%s8] sm:$0xf]
        %v871 = vld [vmem:[%s8 + $0x4] sm:$0xf]
        %v872 = vld [vmem:[%s8 + $0x8] sm:$0xf]
        %v873 = vld [vmem:[%s8 + $0xc] sm:$0xf]
        %v874 = vld [vmem:[%s8 + $0x10] sm:$0xf]
        %v875 = vld [vmem:[%s8 + $0x14] sm:$0xf]
        %v876 = vld [vmem:[%s8 + $0x18] sm:$0xf]
        %v877 = vld [vmem:[%s8 + $0x1c] sm:$0xf]
        %v878 = vld [vmem:[%s8 + $0x20] sm:$0xf]
        %v879 = vld [vmem:[%s8 + $0x24] sm:$0xf]
        %v880 = vld [vmem:[%s8 + $0x28] sm:$0xf]
        %v881 = vld [vmem:[%s8 + $0x2c] sm:$0xf]
        %v882 = vld [vmem:[%s8 + $0x30] sm:$0xf]
        %v883 = vld [vmem:[%s8 + $0x34] sm:$0xf]
        %v884 = vld [vmem:[%s8 + $0x38] sm:$0xf]
        %v885 = vld [vmem:[%s8 + $0x3c] sm:$0xf]
        %v886 = vld [vmem:[%s9] sm:$0x1]
        %v888 = vperm.slane %v886, 0
        %v906 = vunpack.c.l.b16 %v870
        %v907 = vunpack.c.l.b16 %v871
        %v908 = vunpack.c.l.b16 %v872
        %v909 = vunpack.c.l.b16 %v873
        %v910 = vunpack.c.l.b16 %v874
        %v911 = vunpack.c.l.b16 %v875
        %v912 = vunpack.c.l.b16 %v876
        %v913 = vunpack.c.l.b16 %v877
        %v914 = vunpack.c.l.b16 %v878
        %v915 = vunpack.c.l.b16 %v879
        %v916 = vunpack.c.l.b16 %v880
        %v917 = vunpack.c.l.b16 %v881
        %v918 = vunpack.c.l.b16 %v882
        %v919 = vunpack.c.l.b16 %v883
        %v920 = vunpack.c.l.b16 %v884
        %v921 = vunpack.c.l.b16 %v885
        %v922 = vpack.c.b16 %v907, %v906
        %v923 = vpack.c.b16 %v909, %v908
        %v924 = vpack.c.b16 %v911, %v910
        %v925 = vpack.c.b16 %v913, %v912
        %v926 = vpack.c.b16 %v915, %v914
        %v927 = vpack.c.b16 %v917, %v916
        %v928 = vpack.c.b16 %v919, %v918
        %v929 = vpack.c.b16 %v921, %v920
        %v931 = vsel %vm413, %v869, 0
        %v934 = vsel %vm413, %v922, 0
        %v937 = vsel %vm413, %v923, 0
        %v940 = vsel %vm413, %v924, 0
        %v943 = vsel %vm413, %v925, 0
        %v946 = vsel %vm413, %v926, 0
        %v949 = vsel %vm413, %v927, 0
        %v952 = vsel %vm413, %v928, 0
        %v955 = vsel %vm413, %v929, 0
        %957 = vmatpush.bf16.xpose.msra.mxu0 %v955
        %958 = vmatpush.bf16.xpose.msra.mxu0 %v952
        %959 = vmatpush.bf16.xpose.msra.mxu0 %v949
        %960 = vmatpush.bf16.xpose.msra.mxu0 %v946
        %961 = vmatpush.bf16.xpose.msra.mxu0 %v943
        %962 = vmatpush.bf16.xpose.msra.mxu0 %v940
        %963 = vmatpush.bf16.xpose.msra.mxu0 %v937
        %964 = vmatpush.bf16.xpose.msra.mxu0 %v934
        %965 = vmatmul.bf16.gmra.mxu0 %v931
        %v966 = vpop.f32.mrf.mxu0
        %v967 = vadd.f32 %v888, %v966
        %v968 = vpop.f32.mrf.mxu0
        %969 = vdwg.mxu0
        %v970 = vmax.f32 %v967, 0.0
        %v971 = vpack.c.bf16 %v970, %v970
        %v972 = vld [vmem:[%s10] sm:$0xf]
        %v973 = vld [vmem:[%s10 + $0x4] sm:$0xf]
        %v974 = vld [vmem:[%s10 + $0x8] sm:$0xf]
        %v975 = vld [vmem:[%s10 + $0xc] sm:$0xf]
        %v976 = vld [vmem:[%s11] sm:$0x1]
        %v978 = vperm.slane %v976, 0
        %v984 = vunpack.c.l.b16 %v972
        %v985 = vunpack.c.l.b16 %v973
        %v986 = vunpack.c.l.b16 %v974
        %v987 = vunpack.c.l.b16 %v975
        %v988 = vpack.c.b16 %v985, %v984
        %v989 = vpack.c.b16 %v987, %v986
        %992 = vmatpush.bf16.xpose.msra.mxu0 0
        %993 = vmatpush.bf16.xpose.msra.mxu0 0
        %994 = vmatpush.bf16.xpose.msra.mxu0 0
        %995 = vmatpush.bf16.xpose.msra.mxu0 0
        %996 = vmatpush.bf16.xpose.msra.mxu0 0
        %997 = vmatpush.bf16.xpose.msra.mxu0 0
        %998 = vmatpush.bf16.xpose.msra.mxu0 %v989
        %999 = vmatpush.bf16.xpose.msra.mxu0 %v988
        %1000 = vmatmul.bf16.gmra.mxu0 %v971
        %v1001 = vpop.f32.mrf.mxu0
        %v1002 = vadd.f32 %v978, %v1001
        %v1003 = vpop.f32.mrf.mxu0
        %1004 = vdwg.mxu0
        %v1005 = vadd.f32 %v836, %v1002
        %1006 = vst.msk [vmem:[%s404] sm:$0xff] %vm413, %v1005
        %s1007 = sand.u32 %s291, 1
        %s1008 = scalar_lea.sflag [#allocation3], %s1007
        %s1009 = sand.u32 %s291, 1
        %s1010 = smul.addr %s1009, 8
        %s1011 = scalar_lea.vmem [#allocation2], %s1010
        // Predicated region
        $region69: #{tpu_custom_call.1} parent=67 // pred_check
          %p1012 = pneg %p301
        $region70: #{tpu_custom_call.1} parent=67 // pred_check_branch
          %1014 = sbr.rel (%p1012) target = $region72
        $region71: #{tpu_custom_call.1} parent=67 // pred_region
          %1016 = vsyncadd %s1008, 0
          %s1017 = smul.addr %s26, 8
          %s1018 = scalar_lea.hbm %s12, %s1017
          %s1020 = sshll.u32 %s1011, 4
          %s1021 = int_to_ptr.vmem [resolvable:$true] %s1020
          %s1022 = sshll.u32 %s1018, 4
          %s1023 = int_to_ptr.hbm [resolvable:$true] %s1022
          %1025 = dma.vmem_to_hbm [thread:$0]  %s1021, 128, %s1023, %s1008
        $region72: #{tpu_custom_call.1} parent=67 // pred_fallthru
          _
      $region68: #{tpu_custom_call.1} parent=5 // pred_fallthru
        _
      %p1026 = scmp.le.s32.totalorder 2, %s21
      // Predicated region
      $region73: #{tpu_custom_call.1} parent=5 // pred_check
        %p1027 = pneg %p1026
      $region74: #{tpu_custom_call.1} parent=5 // pred_check_branch
        %1029 = sbr.rel (%p1027) target = $region76
      $region75: #{tpu_custom_call.1} parent=5 // pred_region
        %s1030 = ssub.s32 %s21, 2
        // Predicated region
        $region77: #{tpu_custom_call.1} parent=75 // pred_check
          %p1031 = pneg %p307
        $region78: #{tpu_custom_call.1} parent=75 // pred_check_branch
          %1033 = sbr.rel (%p1031) target = $region80
        $region79: #{tpu_custom_call.1} parent=75 // pred_region
          %s1034 = sand.u32 %s292, 1
          %s1035 = scalar_lea.sflag [#allocation3], %s1034
          %s1036 = sand.u32 %s292, 1
          %s1037 = smul.addr %s1036, 8
          %s1038 = scalar_lea.vmem [#allocation2], %s1037
          %1040 = dma.done %s1035, 128
        $region80: #{tpu_custom_call.1} parent=75 // pred_fallthru
          _
      $region76: #{tpu_custom_call.1} parent=5 // pred_fallthru
        _
    $region6: #{tpu_custom_call.1} parent=1 // loop_footer
      %s25 = sadd.s32 1, %s21
    $region7: #{tpu_custom_call.1} parent=1 // loop_footer_branch
      %20 = sbr.rel target = $region3
    $region8: #{tpu_custom_call.1} parent=1 // loop_exit
      _
    %1041 = vsyncpa [#allocation3], 1
    %s1042 = scalar_lea.sflag [#allocation3], 1
    %1043 = vsyncpa %s1042, 1

</llo_original>
